<compile_context>
chip_gen: v7x
topology: tpu7x:2x2x1
jax: 0.10.0
libtpu: 0.0.40
codegen_flags: <defaults>
</compile_context>

<pallas_src>
import functools

import jax
import jax.numpy as jnp
from jax.experimental import pallas as pl
from jax.experimental.pallas import tpu as pltpu


def _gce_partial_kernel(logits_ref, targets_ref, psum_ref, *,
                        q: float, n_valid: int, tn: int, need_mask: bool):
    """One batch tile -> one f32 partial sum of (1 - p_y^q)/q over valid rows."""
    i = pl.program_id(0)

    logits = logits_ref[...].astype(jnp.float32)          # (TN, C) f32 math
    tgt = targets_ref[...]                                 # (TN, 1) int32
    tnn, c = logits.shape

    # Numerically stable softmax statistics along the class (lane) axis.
    row_max = jnp.max(logits, axis=-1, keepdims=True)      # (TN, 1)
    e = jnp.exp(logits - row_max)                          # (TN, C)
    denom = jnp.sum(e, axis=-1, keepdims=True)             # (TN, 1)

    # Gather logit_y = logits[r, targets[r]] via lane-iota one-hot (no dyn gather).
    col = jax.lax.broadcasted_iota(jnp.int32, (tnn, c), 1)  # (TN, C)
    onehot = (col == tgt).astype(jnp.float32)               # (TN, C)
    logit_y = jnp.sum(logits * onehot, axis=-1, keepdims=True)  # (TN, 1)

    # p_y^q in log domain: exp(q * log p_y) = exp(q * (logit_y - row_max - log denom))
    p_y_pow_q = jnp.exp(q * (logit_y - row_max - jnp.log(denom)))  # (TN, 1)
    loss = (1.0 - p_y_pow_q) / q                                   # (TN, 1)

    if need_mask:  # static: only emitted when the batch was padded
        row = jax.lax.broadcasted_iota(jnp.int32, (tnn, 1), 0) + i * tn
        loss = jnp.where(row < n_valid, loss, 0.0)

    psum_ref[...] = jnp.sum(loss).reshape(1, 1)


def _choose_block_rows(n: int, c: int, itemsize: int,
                       budget_bytes: int = 4 * 1024 * 1024) -> int:
    """Largest multiple-of-8 row tile whose single buffer stays under ~4 MiB
    (so 2x double-buffering stays well inside every generation's scoped VMEM)."""
    rows = budget_bytes // max(c * itemsize, 1)
    rows = max(8, min(2048, rows))
    rows = (rows // 8) * 8
    n_up = ((n + 7) // 8) * 8
    return max(8, min(rows, n_up))


def generalized_ce_loss(logits: jax.Array, targets: jax.Array,
                        q: float = 0.7, block_rows: int | None = None) -> jax.Array:
    """logits: [N, C] float (f32 or bf16), targets: [N] int. Returns scalar f32 loss."""
    assert 0.0 < q <= 1.0
    n, c = logits.shape
    itemsize = jnp.dtype(logits.dtype).itemsize
    targets2d = targets.astype(jnp.int32).reshape(n, 1)

    tn = block_rows if block_rows is not None else _choose_block_rows(n, c, itemsize)
    num_tiles = pl.cdiv(n, tn)
    n_pad = num_tiles * tn
    if n_pad != n:
        logits = jnp.pad(logits, ((0, n_pad - n), (0, 0)))
        targets2d = jnp.pad(targets2d, ((0, n_pad - n), (0, 0)))

    cost = pl.CostEstimate(
        flops=int(5 * n * c),
        transcendentals=int(n * c),
        bytes_accessed=int(n * c * itemsize + n * 4 + num_tiles * 4),
    )

    psums = pl.pallas_call(
        functools.partial(_gce_partial_kernel, q=float(q), n_valid=n, tn=tn,
                          need_mask=(n_pad != n)),
        out_shape=jax.ShapeDtypeStruct((num_tiles, 1), jnp.float32),
        grid=(num_tiles,),
        in_specs=[
            pl.BlockSpec((tn, c), lambda i: (i, 0)),
            pl.BlockSpec((tn, 1), lambda i: (i, 0)),
        ],
        out_specs=pl.BlockSpec((1, 1), lambda i: (i, 0)),
        compiler_params=pltpu.CompilerParams(
            dimension_semantics=("parallel",),
            vmem_limit_bytes=32 * 1024 * 1024,
        ),
        cost_estimate=cost,
    )(logits, targets2d)

    # Tiny final reduction over num_tiles partial sums; mean uses the true N.
    return jnp.sum(psums) / jnp.float32(n)


def _reference(logits, targets, q):
    prob = jax.nn.softmax(logits.astype(jnp.float32), axis=1)
    p_y = prob[jnp.arange(logits.shape[0]), targets]
    return jnp.mean((1.0 - p_y ** q) / q)


if __name__ == "__main__":
    key = jax.random.PRNGKey(0)
    k1, k2 = jax.random.split(key)

    N, C = 8, 32          # batch=8, num_classes=32
    q = 0.7

    logits_f32 = jax.random.normal(k1, (N, C), dtype=jnp.float32)
    targets = jax.random.randint(k2, (N,), 0, C, dtype=jnp.int32)

    # f32 path
    loss = jax.block_until_ready(generalized_ce_loss(logits_f32, targets, q=q))
    ref = _reference(logits_f32, targets, q)
    assert jnp.allclose(loss, ref, atol=1e-5, rtol=1e-5), (loss, ref)

    # bf16 storage path (math still f32 in-kernel); compare against the same bf16 inputs.
    logits_bf16 = logits_f32.astype(jnp.bfloat16)
    loss_bf = jax.block_until_ready(generalized_ce_loss(logits_bf16, targets, q=q))
    ref_bf = _reference(logits_bf16, targets, q)
    assert jnp.allclose(loss_bf, ref_bf, atol=1e-4, rtol=1e-4), (loss_bf, ref_bf)

    print("KERNEL_OK")
</pallas_src>

<mosaic_0001>
module attributes {stable_mosaic.version = 11 : i64} {
  func.func @_gce_partial_kernel(%arg0: i32, %arg1: memref<8x32xf32, #tpu.memory_space<vmem>>, %arg2: memref<8x1xi32, #tpu.memory_space<vmem>>, %arg3: memref<1x1xf32, #tpu.memory_space<vmem>>) attributes {dimension_semantics = [#tpu.dimension_semantics<parallel>], iteration_bounds = array<i64: 1>, scalar_prefetch = 0 : i64, scratch_operands = 0 : i64, tpu.core_type = #tpu.core_type<tc>, window_params = [{transform_indices = @transform_0, window_bounds = array<i64: 8, 32>}, {transform_indices = @transform_1, window_bounds = array<i64: 8, 1>}, {transform_indices = @transform_2, window_bounds = array<i64: 1, 1>}]} {
    %c0 = arith.constant 0 : index
    %c0_0 = arith.constant 0 : index
    %0 = vector.load %arg1[%c0, %c0_0] : memref<8x32xf32, #tpu.memory_space<vmem>>, vector<8x32xf32>
    %c0_1 = arith.constant 0 : index
    %c0_2 = arith.constant 0 : index
    %1 = vector.load %arg2[%c0_1, %c0_2] : memref<8x1xi32, #tpu.memory_space<vmem>>, vector<8x1xi32>
    %cst = arith.constant dense<0xFF800000> : vector<8xf32>
    %2 = vector.multi_reduction <maximumf>, %0, %cst [1] : vector<8x32xf32> to vector<8xf32>
    %3 = vector.shape_cast %2 : vector<8xf32> to vector<8x1xf32>
    %4 = vector.broadcast %3 : vector<8x1xf32> to vector<8x32xf32>
    %5 = arith.subf %0, %4 : vector<8x32xf32>
    %6 = math.exp %5 : vector<8x32xf32>
    %cst_3 = arith.constant dense<0.000000e+00> : vector<8xf32>
    %7 = vector.multi_reduction <add>, %6, %cst_3 [1] : vector<8x32xf32> to vector<8xf32>
    %8 = vector.shape_cast %7 : vector<8xf32> to vector<8x1xf32>
    %9 = tpu.iota {dimensions = array<i32: 1>} : vector<8x32xi32>
    %10 = vector.broadcast %1 : vector<8x1xi32> to vector<8x32xi32>
    %11 = arith.cmpi eq, %9, %10 : vector<8x32xi32>
    %12 = arith.extui %11 : vector<8x32xi1> to vector<8x32xi32>
    %13 = arith.sitofp %12 : vector<8x32xi32> to vector<8x32xf32>
    %14 = arith.mulf %0, %13 : vector<8x32xf32>
    %cst_4 = arith.constant dense<0.000000e+00> : vector<8xf32>
    %15 = vector.multi_reduction <add>, %14, %cst_4 [1] : vector<8x32xf32> to vector<8xf32>
    %16 = vector.shape_cast %15 : vector<8xf32> to vector<8x1xf32>
    %17 = arith.subf %16, %3 : vector<8x1xf32>
    %18 = math.log %8 : vector<8x1xf32>
    %19 = arith.subf %17, %18 : vector<8x1xf32>
    %cst_5 = arith.constant 0.699999988 : f32
    %20 = vector.broadcast %cst_5 : f32 to vector<8x1xf32>
    %21 = arith.mulf %20, %19 : vector<8x1xf32>
    %22 = math.exp %21 : vector<8x1xf32>
    %cst_6 = arith.constant 1.000000e+00 : f32
    %23 = vector.broadcast %cst_6 : f32 to vector<8x1xf32>
    %24 = arith.subf %23, %22 : vector<8x1xf32>
    %cst_7 = arith.constant 0.699999988 : f32
    %25 = vector.broadcast %cst_7 : f32 to vector<8x1xf32>
    %26 = arith.divf %24, %25 : vector<8x1xf32>
    %27 = vector.shape_cast %26 : vector<8x1xf32> to vector<1x8x1xf32>
    %cst_8 = arith.constant dense<0.000000e+00> : vector<1xf32>
    %28 = vector.multi_reduction <add>, %27, %cst_8 [1, 2] : vector<1x8x1xf32> to vector<1xf32>
    %29 = vector.shape_cast %28 : vector<1xf32> to vector<1x1x1xf32>
    %30 = vector.extract %29[0, 0, 0] : f32 from vector<1x1x1xf32>
    %31 = vector.broadcast %30 : f32 to vector<1x1xf32>
    %c0_9 = arith.constant 0 : index
    %c0_10 = arith.constant 0 : index
    %32 = vector.load %arg3[%c0_9, %c0_10] : memref<1x1xf32, #tpu.memory_space<vmem>>, vector<1x1xf32>
    tpu.vector_store %arg3[%c0_9, %c0_10], %31 {strides = array<i32>} : memref<1x1xf32, #tpu.memory_space<vmem>>, vector<1x1xf32>,
    return
  }
  func.func @transform_0(%arg0: i32) -> (i32, i32) {
    %c0_i32 = arith.constant 0 : i32
    %c0_i32_0 = arith.constant 0 : i32
    return %arg0, %c0_i32 : i32, i32
  }
  func.func @transform_1(%arg0: i32) -> (i32, i32) {
    %c0_i32 = arith.constant 0 : i32
    %c0_i32_0 = arith.constant 0 : i32
    return %arg0, %c0_i32 : i32, i32
  }
  func.func @transform_2(%arg0: i32) -> (i32, i32) {
    %c0_i32 = arith.constant 0 : i32
    %c0_i32_0 = arith.constant 0 : i32
    return %arg0, %c0_i32 : i32, i32
  }
}

</mosaic_0001>

<llo_original>
// kernel: tpu_custom_call.1
$region0: #{tpu_custom_call.1}
  #allocation0 [shape = 'u32[]', space=smem, size = 0x4, offset = 0x4, fixed_abs, tag = 'smem constant byte address 0x4 - core index']
  #allocation1 [shape = 'u32[144,128]{1,0:T(1,128)}', space=vmem, size = 0x12000, scoped, tag = 'internal scratch']
  %s0 = inlined_call_operand.vmem [shape: f32[8,32], index: 0, kind: input, shape index: {}]
  %s1 = inlined_call_operand.vmem [shape: s32[8,1], index: 1, kind: input, shape index: {}]
  %s2 = inlined_call_operand.hbm [shape: f32[1,1], index: 2, kind: output, shape index: {}]
  %s3 = sld [smem:[#allocation0]]
  $region18: #{tpu_custom_call.1} parent=0
    _
  %s5 = ssub.s32 1, %s3
  %s6 = scalar_select 0, %s5, %s3
  $region1: #{tpu_custom_call.1} parent=0
    #allocation2 [shape = 'u8[512]{0}', space=vmem, size = 0x400, scoped, tag = 'output window, operand 0, single buffered']
    #allocation3 [shape = 's32[1]{0}', space=sflag, size = 0x4, scoped, tag = 'scoped memory for tpu_custom_call.1']
    %7 = vsyncpa [#allocation3], 0
    // Predicated region
    $region2: #{tpu_custom_call.1} parent=1 // pred_check
      _
    $region3: #{tpu_custom_call.1} parent=1 // pred_check_branch
      %9 = sbr.rel (0) target = $region5
    $region4: #{tpu_custom_call.1} parent=1 // pred_region
      _
    $region5: #{tpu_custom_call.1} parent=1 // pred_fallthru
      _
    // Predicated region
    $region6: #{tpu_custom_call.1} parent=1 // pred_check
      _
    $region7: #{tpu_custom_call.1} parent=1 // pred_check_branch
      %11 = sbr.rel (0) target = $region9
    $region8: #{tpu_custom_call.1} parent=1 // pred_region
      _
    $region9: #{tpu_custom_call.1} parent=1 // pred_fallthru
      _
    %v12 = vld [vmem:[%s0] sm:$0xff]
    %v13 = vld [vmem:[%s1] sm:$0xff]
    %vm14 = vcmask 261120
    %v15 = vsel %vm14, %v12, -inf
    %16 = vmax.xlane.f32.xlu0 %v15
    %v17 = vpop.xlane.xlu0 %16
    %v18 = vsub.f32 %v12, %v17
    %v19 = vmul.f32 %v18, 1.442695
    %v20 = vpow.pop %v19
    %v21 = vsel %vm14, %v20, 0.0
    %22 = vadd.xlane.f32.xlu0 %v21
    %v23 = vpop.xlane.xlu0 %22
    %v24 = vlaneseq
    %v25 = vand.u32 %v24, 127
    %26 = vset.pattern.permute.xlu0 0
    %27 = vperm.xlu0 %26, %v13
    %v28 = vpop.permute.xlu0 %27
    %vm29 = vcmp.eq.s32.totalorder %v25, %v28
    %v30 = vsel %vm29, 1, 0
    %v31 = vcvt.s32.f32 %v30
    %v32 = vmul.f32 %v12, %v31
    %v33 = vsel %vm14, %v32, 0.0
    %34 = vadd.xlane.f32.xlu0 %v33
    %v35 = vpop.xlane.xlu0 %34
    %v36 = vsub.f32 %v35, %v17
    %v37 = vlog2.pop %v23
    %v38 = vmul.f32 %v37, 0.6931472
    %v39 = vsub.f32 %v36, %v38
    %v40 = vmul.f32 %v39, 0.7
    %v41 = vmul.f32 %v40, 1.442695
    %v42 = vpow.pop %v41
    %v43 = vsub.f32 1.0, %v42
    %v44 = vrcp.pop 0.7
    %v45 = vmul.f32 %v43, %v44
    %vm46 = vcmask 7168
    %v47 = vsel %vm46, %v45, 0.0
    %48 = vadd.xlane.f32.xlu0 %v47
    %v49 = vpop.xlane.xlu0 %48
    %v50 = vrot.slane %v49, 4
    %v51 = vadd.f32 %v49, %v50
    %v52 = vrot.slane %v51, 2
    %v53 = vadd.f32 %v51, %v52
    %v54 = vrot.slane %v53, 1
    %v55 = vadd.f32 %v53, %v54
    %s56 = vtos %v55
    %v57 = vstv %s56
    %vm58 = vcmask 0
    %59 = vst.msk [vmem:[#allocation2] sm:$0x1] %vm58, %v57
    // Predicated region
    $region10: #{tpu_custom_call.1} parent=1 // pred_check
      _
    $region11: #{tpu_custom_call.1} parent=1 // pred_check_branch
      %61 = sbr.rel (0) target = $region13
    $region12: #{tpu_custom_call.1} parent=1 // pred_region
      %s63 = ssub.s32 16, 16
      %64 = vsyncadd [#allocation3], %s63
      %s66 = sshll.u32 [#allocation2], 4
      %s67 = int_to_ptr.vmem [resolvable:$true] %s66
      %69 = dma.vmem_to_hbm [thread:$0]  %s67, 16, %s2, [#allocation3]
    $region13: #{tpu_custom_call.1} parent=1 // pred_fallthru
      _
    // Predicated region
    $region14: #{tpu_custom_call.1} parent=1 // pred_check
      _
    $region15: #{tpu_custom_call.1} parent=1 // pred_check_branch
      %71 = sbr.rel (0) target = $region17
    $region16: #{tpu_custom_call.1} parent=1 // pred_region
      %72 = dma.done [#allocation3], 16
    $region17: #{tpu_custom_call.1} parent=1 // pred_fallthru
      _
    %73 = vsyncpa [#allocation3], 1

</llo_original>
